<compile_context>
chip_gen: v7x
topology: tpu7x:2x2x1
jax: 0.10.0
libtpu: 0.0.40
codegen_flags: <defaults>
</compile_context>

<pallas_src>
import jax
import jax.numpy as jnp
from jax.experimental import pallas as pl
from jax.experimental.pallas import tpu as pltpu


NEG_BIG = -1e30  # padded-class logit bias; exp underflows to exactly 0.0


def mlp_kernel(x_ref, w1_ref, b1_ref, w2_ref, b2_ref, w3_ref, b3_ref, out_ref):
    # Whole hot path (3 matmuls, 2 ReLUs, softmax) lives in the kernel.
    x = x_ref[...]                                                   # (TB, 784) bf16

    # fc1: bf16 x bf16 -> f32 accumulate on the MXU; bias/ReLU in f32.
    h1 = jnp.dot(x, w1_ref[...], preferred_element_type=jnp.float32) + b1_ref[...]
    h1 = jnp.maximum(h1, 0.0)                                        # (TB, 128) f32

    # fc2: bf16 MXU path (output lanes zero-padded 64 -> 128; padded lanes stay 0).
    h2 = jnp.dot(h1.astype(jnp.bfloat16), w2_ref[...],
                 preferred_element_type=jnp.float32) + b2_ref[...]
    h2 = jnp.maximum(h2, 0.0)                                        # (TB, 128) f32

    # fc3: bf16 MXU path (classes padded 10 -> 128; padded logits are -1e30 via f32 bias).
    logits = jnp.dot(h2.astype(jnp.bfloat16), w3_ref[...],
                     preferred_element_type=jnp.float32) + b3_ref[...]

    # Numerically-stable softmax over the last axis (== PyTorch dim=1).
    # Padded classes contribute exp(-1e30 - m) == 0, so the first 10 columns
    # are exactly the 10-way softmax.  Exact divide so rows sum to ~1.
    m = jnp.max(logits, axis=-1, keepdims=True)
    e = jnp.exp(logits - m)
    denom = jnp.sum(e, axis=-1, keepdims=True)
    out_ref[...] = e / denom                                         # (TB, 128) f32


def _round_up(n, m):
    return ((n + m - 1) // m) * m


def prepare_params(params):
    """One-time weight prep: cast w1/w2/w3 to bf16, lane-pad fc2/fc3 to 128
    output lanes.  Biases stay f32 (padded fc3 bias = -1e30 so the padded
    classes get exactly-zero softmax mass)."""
    w1, b1, w2, b2, w3, b3 = params
    w2p = jnp.zeros((128, 128), jnp.float32).at[:, :64].set(w2).astype(jnp.bfloat16)
    b2p = jnp.zeros((1, 128), jnp.float32).at[:, :64].set(b2)
    w3p = jnp.zeros((128, 128), jnp.float32).at[:64, :10].set(w3).astype(jnp.bfloat16)
    b3p = jnp.full((1, 128), NEG_BIG, jnp.float32).at[:, :10].set(b3)
    return w1.astype(jnp.bfloat16), b1, w2p, b2p, w3p, b3p


def red_neuronal_forward(x, prepared_params, *, tile_b=1024):
    """x: (B, 784) float32 -> (B, 10) float32 softmax probabilities.
    prepared_params: output of prepare_params()."""
    B = x.shape[0]
    w1, b1, w2, b2, w3, b3 = prepared_params

    # Cast BEFORE padding so no full-size f32 copy of the padded batch is made.
    x = x.astype(jnp.bfloat16)

    # Batch tile: multiple of 16 (bf16 sublane packing), clamped to tile_b,
    # and capped so the grid has >= ~4 steps when the batch allows it
    # (keeps both v7x TensorCores busy with pipelined steps).
    quarter = _round_up(pl.cdiv(B, 4), 16)
    tb = max(16, min(_round_up(tile_b, 16), quarter))
    B_pad = _round_up(B, tb)
    if B_pad != B:
        x = jnp.pad(x, ((0, B_pad - B), (0, 0)))

    grid = (B_pad // tb,)

    def full(shape):
        return pl.BlockSpec(shape, lambda i: (0, 0))

    n_param_bytes = sum(
        int(p.size) * p.dtype.itemsize for p in (w1, b1, w2, b2, w3, b3)
    )
    cost = pl.CostEstimate(
        flops=2 * B_pad * (784 * 128 + 128 * 128 + 128 * 128),
        transcendentals=B_pad * 128,
        bytes_accessed=B_pad * 784 * 2 + n_param_bytes + B_pad * 128 * 4,
    )

    out_padded = pl.pallas_call(
        mlp_kernel,
        out_shape=jax.ShapeDtypeStruct((B_pad, 128), jnp.float32),
        grid_spec=pltpu.PrefetchScalarGridSpec(
            num_scalar_prefetch=0,
            grid=grid,
            in_specs=[
                pl.BlockSpec((tb, 784), lambda i: (i, 0)),    # x tile (bf16)
                full((784, 128)), full((1, 128)),             # w1 (bf16), b1 (f32)
                full((128, 128)), full((1, 128)),             # w2 (bf16, lane-padded), b2
                full((128, 128)), full((1, 128)),             # w3 (bf16, lane-padded), b3
            ],
            out_specs=pl.BlockSpec((tb, 128), lambda i: (i, 0)),
        ),
        compiler_params=pltpu.CompilerParams(
            dimension_semantics=("parallel",),   # megacore / v7x 2-TC split
            vmem_limit_bytes=32 * 1024 * 1024,   # headroom for large-tile sweeps (v5e default is 16 MiB)
        ),
        cost_estimate=cost,
    )(x, w1, b1, w2, b2, w3, b3)

    return out_padded[:B, :10]


def init_params(key):
    """Deterministic synthetic params.  Shapes mirror nn.Linear(784,128)/(128,64)/(64,10),
    stored as (in, out) for x @ W."""
    ks = jax.random.split(key, 6)

    def linear(kw, kb, fan_in, fan_out):
        bound = 1.0 / jnp.sqrt(fan_in)
        w = jax.random.uniform(kw, (fan_in, fan_out), jnp.float32, -bound, bound)
        b = jax.random.uniform(kb, (1, fan_out), jnp.float32, -bound, bound)
        return w, b

    w1, b1 = linear(ks[0], ks[1], 784, 128)
    w2, b2 = linear(ks[2], ks[3], 128, 64)
    w3, b3 = linear(ks[4], ks[5], 64, 10)
    return (w1, b1, w2, b2, w3, b3)


def reference_forward_bf16(x, params):
    """Pure-JAX reference with the same bf16-inputs / f32-accumulate matmul
    path as the kernel (tight-tolerance comparison target)."""
    w1, b1, w2, b2, w3, b3 = params
    h1 = jnp.dot(x.astype(jnp.bfloat16), w1.astype(jnp.bfloat16),
                 preferred_element_type=jnp.float32) + b1
    h1 = jnp.maximum(h1, 0.0)
    h2 = jnp.dot(h1.astype(jnp.bfloat16), w2.astype(jnp.bfloat16),
                 preferred_element_type=jnp.float32) + b2
    h2 = jnp.maximum(h2, 0.0)
    logits = jnp.dot(h2.astype(jnp.bfloat16), w3.astype(jnp.bfloat16),
                     preferred_element_type=jnp.float32) + b3
    return jax.nn.softmax(logits, axis=1)


def reference_forward_f32(x, params):
    """Full-f32 reference matching the original PyTorch module's semantics
    (loose-tolerance sanity check for the bf16 MXU path)."""
    w1, b1, w2, b2, w3, b3 = params
    h1 = jnp.maximum(x @ w1 + b1, 0.0)
    h2 = jnp.maximum(h1 @ w2 + b2, 0.0)
    return jax.nn.softmax(h2 @ w3 + b3, axis=1)


if __name__ == "__main__":
    key = jax.random.PRNGKey(0)
    k_x, k_p = jax.random.split(key)

    B = 64
    x = jax.random.normal(k_x, (B, 784), jnp.float32)
    params = init_params(k_p)
    prepped = prepare_params(params)   # one-time weight prep, hoisted out of the call path

    ref_bf16 = reference_forward_bf16(x, params)
    ref_f32 = reference_forward_f32(x, params)

    forward = jax.jit(red_neuronal_forward, static_argnames=("tile_b",))

    # Small tile -> multi-step grid, exercises the tiled batch path.
    out = jax.block_until_ready(forward(x, prepped, tile_b=16))
    assert out.shape == (B, 10)
    assert jnp.allclose(out, ref_bf16, atol=2e-3, rtol=2e-3), "mismatch vs bf16-path reference"
    assert jnp.allclose(out, ref_f32, atol=2e-2), "mismatch vs f32 PyTorch-semantics reference"
    assert jnp.allclose(jnp.sum(out, axis=1), 1.0, atol=1e-3), "softmax rows must sum to ~1"

    # Ragged batch with the default (large) tile exercises the padding path.
    out2 = jax.block_until_ready(forward(x[:37], prepped))
    assert out2.shape == (37, 10)
    assert jnp.allclose(out2, ref_bf16[:37], atol=2e-3, rtol=2e-3), "ragged-batch mismatch"
    assert jnp.allclose(jnp.sum(out2, axis=1), 1.0, atol=1e-3), "ragged softmax rows must sum to ~1"

    print("KERNEL_OK")
</pallas_src>

<mosaic_0001>
module attributes {stable_mosaic.version = 11 : i64} {
  func.func @mlp_kernel(%arg0: i32, %arg1: memref<16x784xbf16, #tpu.memory_space<vmem>>, %arg2: memref<784x128xbf16, #tpu.memory_space<vmem>>, %arg3: memref<1x128xf32, #tpu.memory_space<vmem>>, %arg4: memref<128x128xbf16, #tpu.memory_space<vmem>>, %arg5: memref<1x128xf32, #tpu.memory_space<vmem>>, %arg6: memref<128x128xbf16, #tpu.memory_space<vmem>>, %arg7: memref<1x128xf32, #tpu.memory_space<vmem>>, %arg8: memref<16x128xf32, #tpu.memory_space<vmem>>) attributes {dimension_semantics = [#tpu.dimension_semantics<parallel>], iteration_bounds = array<i64: 4>, scalar_prefetch = 0 : i64, scratch_operands = 0 : i64, tpu.core_type = #tpu.core_type<tc>, window_params = [{transform_indices = @transform_0, window_bounds = array<i64: 16, 784>}, {pipeline_mode = #tpu.pipeline_mode<synchronous>, transform_indices = @transform_1, window_bounds = array<i64: 784, 128>}, {pipeline_mode = #tpu.pipeline_mode<synchronous>, transform_indices = @transform_2, window_bounds = array<i64: 1, 128>}, {pipeline_mode = #tpu.pipeline_mode<synchronous>, transform_indices = @transform_3, window_bounds = array<i64: 128, 128>}, {pipeline_mode = #tpu.pipeline_mode<synchronous>, transform_indices = @transform_4, window_bounds = array<i64: 1, 128>}, {pipeline_mode = #tpu.pipeline_mode<synchronous>, transform_indices = @transform_5, window_bounds = array<i64: 128, 128>}, {pipeline_mode = #tpu.pipeline_mode<synchronous>, transform_indices = @transform_6, window_bounds = array<i64: 1, 128>}, {transform_indices = @transform_7, window_bounds = array<i64: 16, 128>}]} {
    %c0 = arith.constant 0 : index
    %c0_0 = arith.constant 0 : index
    %0 = vector.load %arg1[%c0, %c0_0] : memref<16x784xbf16, #tpu.memory_space<vmem>>, vector<16x784xbf16>
    %c0_1 = arith.constant 0 : index
    %c0_2 = arith.constant 0 : index
    %1 = vector.load %arg2[%c0_1, %c0_2] : memref<784x128xbf16, #tpu.memory_space<vmem>>, vector<784x128xbf16>
    %cst = arith.constant dense<0.000000e+00> : vector<16x128xf32>
    %2 = tpu.matmul %0, %1, %cst {dimension_numbers = #tpu.dot_dimension_numbers<[1], [0], [0], [1], [0, 0, 1, 1], [], []>} : vector<16x784xbf16>, vector<784x128xbf16>, vector<16x128xf32> -> vector<16x128xf32>
    %c0_3 = arith.constant 0 : index
    %c0_4 = arith.constant 0 : index
    %3 = vector.load %arg3[%c0_3, %c0_4] : memref<1x128xf32, #tpu.memory_space<vmem>>, vector<1x128xf32>
    %4 = vector.broadcast %3 : vector<1x128xf32> to vector<16x128xf32>
    %5 = arith.addf %2, %4 : vector<16x128xf32>
    %cst_5 = arith.constant 0.000000e+00 : f32
    %6 = vector.broadcast %cst_5 : f32 to vector<16x128xf32>
    %7 = arith.maximumf %5, %6 : vector<16x128xf32>
    %8 = arith.truncf %7 : vector<16x128xf32> to vector<16x128xbf16>
    %c0_6 = arith.constant 0 : index
    %c0_7 = arith.constant 0 : index
    %9 = vector.load %arg4[%c0_6, %c0_7] : memref<128x128xbf16, #tpu.memory_space<vmem>>, vector<128x128xbf16>
    %cst_8 = arith.constant dense<0.000000e+00> : vector<16x128xf32>
    %10 = tpu.matmul %8, %9, %cst_8 {dimension_numbers = #tpu.dot_dimension_numbers<[1], [0], [0], [1], [0, 0, 1, 1], [], []>} : vector<16x128xbf16>, vector<128x128xbf16>, vector<16x128xf32> -> vector<16x128xf32>
    %c0_9 = arith.constant 0 : index
    %c0_10 = arith.constant 0 : index
    %11 = vector.load %arg5[%c0_9, %c0_10] : memref<1x128xf32, #tpu.memory_space<vmem>>, vector<1x128xf32>
    %12 = vector.broadcast %11 : vector<1x128xf32> to vector<16x128xf32>
    %13 = arith.addf %10, %12 : vector<16x128xf32>
    %cst_11 = arith.constant 0.000000e+00 : f32
    %14 = vector.broadcast %cst_11 : f32 to vector<16x128xf32>
    %15 = arith.maximumf %13, %14 : vector<16x128xf32>
    %16 = arith.truncf %15 : vector<16x128xf32> to vector<16x128xbf16>
    %c0_12 = arith.constant 0 : index
    %c0_13 = arith.constant 0 : index
    %17 = vector.load %arg6[%c0_12, %c0_13] : memref<128x128xbf16, #tpu.memory_space<vmem>>, vector<128x128xbf16>
    %cst_14 = arith.constant dense<0.000000e+00> : vector<16x128xf32>
    %18 = tpu.matmul %16, %17, %cst_14 {dimension_numbers = #tpu.dot_dimension_numbers<[1], [0], [0], [1], [0, 0, 1, 1], [], []>} : vector<16x128xbf16>, vector<128x128xbf16>, vector<16x128xf32> -> vector<16x128xf32>
    %c0_15 = arith.constant 0 : index
    %c0_16 = arith.constant 0 : index
    %19 = vector.load %arg7[%c0_15, %c0_16] : memref<1x128xf32, #tpu.memory_space<vmem>>, vector<1x128xf32>
    %20 = vector.broadcast %19 : vector<1x128xf32> to vector<16x128xf32>
    %21 = arith.addf %18, %20 : vector<16x128xf32>
    %cst_17 = arith.constant dense<0xFF800000> : vector<16xf32>
    %22 = vector.multi_reduction <maximumf>, %21, %cst_17 [1] : vector<16x128xf32> to vector<16xf32>
    %23 = vector.shape_cast %22 : vector<16xf32> to vector<16x1xf32>
    %24 = vector.broadcast %23 : vector<16x1xf32> to vector<16x128xf32>
    %25 = arith.subf %21, %24 : vector<16x128xf32>
    %26 = math.exp %25 : vector<16x128xf32>
    %cst_18 = arith.constant dense<0.000000e+00> : vector<16xf32>
    %27 = vector.multi_reduction <add>, %26, %cst_18 [1] : vector<16x128xf32> to vector<16xf32>
    %28 = vector.shape_cast %27 : vector<16xf32> to vector<16x1xf32>
    %29 = vector.broadcast %28 : vector<16x1xf32> to vector<16x128xf32>
    %30 = arith.divf %26, %29 : vector<16x128xf32>
    %c0_19 = arith.constant 0 : index
    %c0_20 = arith.constant 0 : index
    %31 = vector.load %arg8[%c0_19, %c0_20] : memref<16x128xf32, #tpu.memory_space<vmem>>, vector<16x128xf32>
    tpu.vector_store %arg8[%c0_19, %c0_20], %30 {strides = array<i32>} : memref<16x128xf32, #tpu.memory_space<vmem>>, vector<16x128xf32>,
    return
  }
  func.func @transform_0(%arg0: i32) -> (i32, i32) {
    %c0_i32 = arith.constant 0 : i32
    %c0_i32_0 = arith.constant 0 : i32
    return %arg0, %c0_i32 : i32, i32
  }
  func.func @transform_1(%arg0: i32) -> (i32, i32) {
    %c0_i32 = arith.constant 0 : i32
    %c0_i32_0 = arith.constant 0 : i32
    %c0_i32_1 = arith.constant 0 : i32
    return %c0_i32, %c0_i32_0 : i32, i32
  }
  func.func @transform_2(%arg0: i32) -> (i32, i32) {
    %c0_i32 = arith.constant 0 : i32
    %c0_i32_0 = arith.constant 0 : i32
    %c0_i32_1 = arith.constant 0 : i32
    return %c0_i32, %c0_i32_0 : i32, i32
  }
  func.func @transform_3(%arg0: i32) -> (i32, i32) {
    %c0_i32 = arith.constant 0 : i32
    %c0_i32_0 = arith.constant 0 : i32
    %c0_i32_1 = arith.constant 0 : i32
    return %c0_i32, %c0_i32_0 : i32, i32
  }
  func.func @transform_4(%arg0: i32) -> (i32, i32) {
    %c0_i32 = arith.constant 0 : i32
    %c0_i32_0 = arith.constant 0 : i32
    %c0_i32_1 = arith.constant 0 : i32
    return %c0_i32, %c0_i32_0 : i32, i32
  }
  func.func @transform_5(%arg0: i32) -> (i32, i32) {
    %c0_i32 = arith.constant 0 : i32
    %c0_i32_0 = arith.constant 0 : i32
    %c0_i32_1 = arith.constant 0 : i32
    return %c0_i32, %c0_i32_0 : i32, i32
  }
  func.func @transform_6(%arg0: i32) -> (i32, i32) {
    %c0_i32 = arith.constant 0 : i32
    %c0_i32_0 = arith.constant 0 : i32
    %c0_i32_1 = arith.constant 0 : i32
    return %c0_i32, %c0_i32_0 : i32, i32
  }
  func.func @transform_7(%arg0: i32) -> (i32, i32) {
    %c0_i32 = arith.constant 0 : i32
    %c0_i32_0 = arith.constant 0 : i32
    return %arg0, %c0_i32 : i32, i32
  }
}

</mosaic_0001>

<llo_original>
// kernel: red_neuronal_forward.1
$region0: #{red_neuronal_forward.1}
  #allocation0 [shape = 'u32[]', space=smem, size = 0x4, offset = 0x4, fixed_abs, tag = 'smem constant byte address 0x4 - core index']
  #allocation1 [shape = 'u32[144,128]{1,0:T(1,128)}', space=vmem, size = 0x12000, scoped, tag = 'internal scratch']
  %s0 = inlined_call_operand.vmem [shape: bf16[64,784], index: 0, kind: input, shape index: {}]
  %s1 = inlined_call_operand.vmem [shape: bf16[784,128], index: 1, kind: input, shape index: {}]
  %s2 = inlined_call_operand.vmem [shape: f32[1,128], index: 2, kind: input, shape index: {}]
  %s3 = inlined_call_operand.vmem [shape: bf16[128,128], index: 3, kind: input, shape index: {}]
  %s4 = inlined_call_operand.vmem [shape: f32[1,128], index: 4, kind: input, shape index: {}]
  %s5 = inlined_call_operand.vmem [shape: bf16[128,128], index: 5, kind: input, shape index: {}]
  %s6 = inlined_call_operand.vmem [shape: f32[1,128], index: 6, kind: input, shape index: {}]
  %s7 = inlined_call_operand.vmem [shape: f32[64,128], index: 7, kind: output, shape index: {}]
  %s8 = sld [smem:[#allocation0]]
  $region61: #{red_neuronal_forward.1} parent=0
    _
  %s10 = ssub.s32 1, %s8
  %s11 = scalar_select 0, %s10, %s8
  loop: start=0, step=1, limit=6
  $region2: #{red_neuronal_forward.1} parent=0 // loop_pre_header
    _
  $region3: #{red_neuronal_forward.1} parent=0 // loop_header
    %s13 = sphi 0, %s17
    %p14 = scmp.ge.s32.totalorder %s13, 6
    %s23 = sphi 0, %s25
    %s26 = sphi 0, %s23
    %s27 = sphi 0, %s26
    %s43 = sphi 0, %s27
    %s47 = sphi 0, %s47
    %s49 = sphi 0, %s47
    %s50 = sphi 0, %s49
    %s64 = sphi 0, %s50
    %s68 = sphi 0, %s68
    %s70 = sphi 0, %s68
    %s71 = sphi 0, %s70
    %s85 = sphi 0, %s71
    %s89 = sphi 0, %s89
    %s91 = sphi 0, %s89
    %s92 = sphi 0, %s91
    %s106 = sphi 0, %s92
    %s110 = sphi 0, %s110
    %s112 = sphi 0, %s110
    %s113 = sphi 0, %s112
    %s127 = sphi 0, %s113
    %s131 = sphi 0, %s131
    %s133 = sphi 0, %s131
    %s134 = sphi 0, %s133
    %s148 = sphi 0, %s134
    %s152 = sphi 0, %s152
    %s154 = sphi 0, %s152
    %s155 = sphi 0, %s154
    %s169 = sphi 0, %s155
    %s175 = sphi 0, %s177
    %s178 = sphi 0, %s175
    %s179 = sphi 0, %s178
    %s195 = sphi 0, %s179
  $region4: #{red_neuronal_forward.1} parent=0 // loop_header_branch
    %16 = sbr.rel (%p14) target = $region8
  $region5: #{red_neuronal_forward.1} parent=0 // loop_body
    %s18 = ssub.s32 %s13, 1
    %s19 = ssub.s32 %s13, 2
    %s20 = sadd.s32 %s13, 1
    %s21 = ssub.s32 %s13, %s20
    %p22 = scmp.eq.s32.totalorder %s21, 0
    %s24 = sadd.s32 %s23, 1
    %s25 = scalar_select %p22, %s23, %s24
    %p28 = pneg %p22
    %p29 = scmp.eq.s32.totalorder %s13, 3
    %p30 = por %p28, %p29
    %p31 = scmp.ne.s32.totalorder %s23, %s26
    %p32 = scmp.eq.s32.totalorder %s13, 0
    %p33 = por %p31, %p32
    %p34 = scmp.ne.s32.totalorder %s23, %s26
    %p35 = scmp.eq.s32.totalorder %s18, 3
    %p36 = por %p34, %p35
    %p37 = scmp.ne.s32.totalorder %s26, %s27
    %p38 = scmp.eq.s32.totalorder %s18, 0
    %p39 = por %p37, %p38
    %p40 = scmp.ne.s32.totalorder %s26, %s27
    %p41 = scmp.eq.s32.totalorder %s19, 3
    %p42 = por %p40, %p41
    %p44 = scmp.ne.s32.totalorder %s27, %s43
    %p45 = scmp.eq.s32.totalorder %s19, 0
    %p46 = por %p44, %p45
    %s48 = sadd.s32 %s47, 1
    %p51 = scmp.eq.s32.totalorder %s13, 3
    %p52 = scmp.ne.s32.totalorder %s47, %s49
    %p53 = scmp.eq.s32.totalorder %s13, 0
    %p54 = por %p52, %p53
    %p55 = scmp.ne.s32.totalorder %s47, %s49
    %p56 = scmp.eq.s32.totalorder %s18, 3
    %p57 = por %p55, %p56
    %p58 = scmp.ne.s32.totalorder %s49, %s50
    %p59 = scmp.eq.s32.totalorder %s18, 0
    %p60 = por %p58, %p59
    %p61 = scmp.ne.s32.totalorder %s49, %s50
    %p62 = scmp.eq.s32.totalorder %s19, 3
    %p63 = por %p61, %p62
    %p65 = scmp.ne.s32.totalorder %s50, %s64
    %p66 = scmp.eq.s32.totalorder %s19, 0
    %p67 = por %p65, %p66
    %s69 = sadd.s32 %s68, 1
    %p72 = scmp.eq.s32.totalorder %s13, 3
    %p73 = scmp.ne.s32.totalorder %s68, %s70
    %p74 = scmp.eq.s32.totalorder %s13, 0
    %p75 = por %p73, %p74
    %p76 = scmp.ne.s32.totalorder %s68, %s70
    %p77 = scmp.eq.s32.totalorder %s18, 3
    %p78 = por %p76, %p77
    %p79 = scmp.ne.s32.totalorder %s70, %s71
    %p80 = scmp.eq.s32.totalorder %s18, 0
    %p81 = por %p79, %p80
    %p82 = scmp.ne.s32.totalorder %s70, %s71
    %p83 = scmp.eq.s32.totalorder %s19, 3
    %p84 = por %p82, %p83
    %p86 = scmp.ne.s32.totalorder %s71, %s85
    %p87 = scmp.eq.s32.totalorder %s19, 0
    %p88 = por %p86, %p87
    %s90 = sadd.s32 %s89, 1
    %p93 = scmp.eq.s32.totalorder %s13, 3
    %p94 = scmp.ne.s32.totalorder %s89, %s91
    %p95 = scmp.eq.s32.totalorder %s13, 0
    %p96 = por %p94, %p95
    %p97 = scmp.ne.s32.totalorder %s89, %s91
    %p98 = scmp.eq.s32.totalorder %s18, 3
    %p99 = por %p97, %p98
    %p100 = scmp.ne.s32.totalorder %s91, %s92
    %p101 = scmp.eq.s32.totalorder %s18, 0
    %p102 = por %p100, %p101
    %p103 = scmp.ne.s32.totalorder %s91, %s92
    %p104 = scmp.eq.s32.totalorder %s19, 3
    %p105 = por %p103, %p104
    %p107 = scmp.ne.s32.totalorder %s92, %s106
    %p108 = scmp.eq.s32.totalorder %s19, 0
    %p109 = por %p107, %p108
    %s111 = sadd.s32 %s110, 1
    %p114 = scmp.eq.s32.totalorder %s13, 3
    %p115 = scmp.ne.s32.totalorder %s110, %s112
    %p116 = scmp.eq.s32.totalorder %s13, 0
    %p117 = por %p115, %p116
    %p118 = scmp.ne.s32.totalorder %s110, %s112
    %p119 = scmp.eq.s32.totalorder %s18, 3
    %p120 = por %p118, %p119
    %p121 = scmp.ne.s32.totalorder %s112, %s113
    %p122 = scmp.eq.s32.totalorder %s18, 0
    %p123 = por %p121, %p122
    %p124 = scmp.ne.s32.totalorder %s112, %s113
    %p125 = scmp.eq.s32.totalorder %s19, 3
    %p126 = por %p124, %p125
    %p128 = scmp.ne.s32.totalorder %s113, %s127
    %p129 = scmp.eq.s32.totalorder %s19, 0
    %p130 = por %p128, %p129
    %s132 = sadd.s32 %s131, 1
    %p135 = scmp.eq.s32.totalorder %s13, 3
    %p136 = scmp.ne.s32.totalorder %s131, %s133
    %p137 = scmp.eq.s32.totalorder %s13, 0
    %p138 = por %p136, %p137
    %p139 = scmp.ne.s32.totalorder %s131, %s133
    %p140 = scmp.eq.s32.totalorder %s18, 3
    %p141 = por %p139, %p140
    %p142 = scmp.ne.s32.totalorder %s133, %s134
    %p143 = scmp.eq.s32.totalorder %s18, 0
    %p144 = por %p142, %p143
    %p145 = scmp.ne.s32.totalorder %s133, %s134
    %p146 = scmp.eq.s32.totalorder %s19, 3
    %p147 = por %p145, %p146
    %p149 = scmp.ne.s32.totalorder %s134, %s148
    %p150 = scmp.eq.s32.totalorder %s19, 0
    %p151 = por %p149, %p150
    %s153 = sadd.s32 %s152, 1
    %p156 = scmp.eq.s32.totalorder %s13, 3
    %p157 = scmp.ne.s32.totalorder %s152, %s154
    %p158 = scmp.eq.s32.totalorder %s13, 0
    %p159 = por %p157, %p158
    %p160 = scmp.ne.s32.totalorder %s152, %s154
    %p161 = scmp.eq.s32.totalorder %s18, 3
    %p162 = por %p160, %p161
    %p163 = scmp.ne.s32.totalorder %s154, %s155
    %p164 = scmp.eq.s32.totalorder %s18, 0
    %p165 = por %p163, %p164
    %p166 = scmp.ne.s32.totalorder %s154, %s155
    %p167 = scmp.eq.s32.totalorder %s19, 3
    %p168 = por %p166, %p167
    %p170 = scmp.ne.s32.totalorder %s155, %s169
    %p171 = scmp.eq.s32.totalorder %s19, 0
    %p172 = por %p170, %p171
    %s173 = ssub.s32 %s13, %s20
    %p174 = scmp.eq.s32.totalorder %s173, 0
    %s176 = sadd.s32 %s175, 1
    %s177 = scalar_select %p174, %s175, %s176
    %p180 = pneg %p174
    %p181 = scmp.eq.s32.totalorder %s13, 3
    %p182 = por %p180, %p181
    %p183 = scmp.ne.s32.totalorder %s175, %s178
    %p184 = scmp.eq.s32.totalorder %s13, 0
    %p185 = por %p183, %p184
    %p186 = scmp.ne.s32.totalorder %s175, %s178
    %p187 = scmp.eq.s32.totalorder %s18, 3
    %p188 = por %p186, %p187
    %p189 = scmp.ne.s32.totalorder %s178, %s179
    %p190 = scmp.eq.s32.totalorder %s18, 0
    %p191 = por %p189, %p190
    %p192 = scmp.ne.s32.totalorder %s178, %s179
    %p193 = scmp.eq.s32.totalorder %s19, 3
    %p194 = por %p192, %p193
    %p196 = scmp.ne.s32.totalorder %s179, %s195
    %p197 = scmp.eq.s32.totalorder %s19, 0
    %p198 = por %p196, %p197
    %p199 = scmp.le.s32.totalorder 1, %s13
    %p200 = scmp.lt.s32.totalorder %s13, 5
    %p201 = pnand %p199, %p200
    %p202 = pneg %p201
    // Predicated region
    $region9: #{red_neuronal_forward.1} parent=5 // pred_check
      _
    $region10: #{red_neuronal_forward.1} parent=5 // pred_check_branch
      %204 = sbr.rel (%p201) target = $region12
    $region11: #{red_neuronal_forward.1} parent=5 // pred_region
      %s205 = ssub.s32 %s13, 1
      // Predicated region
      $region13: #{red_neuronal_forward.1} parent=11 // pred_check
        %p206 = pneg %p60
      $region14: #{red_neuronal_forward.1} parent=11 // pred_check_branch
        %208 = sbr.rel (%p206) target = $region16
      $region15: #{red_neuronal_forward.1} parent=11 // pred_region
        _
      $region16: #{red_neuronal_forward.1} parent=11 // pred_fallthru
        _
      // Predicated region
      $region17: #{red_neuronal_forward.1} parent=11 // pred_check
        %p209 = pneg %p81
      $region18: #{red_neuronal_forward.1} parent=11 // pred_check_branch
        %211 = sbr.rel (%p209) target = $region20
      $region19: #{red_neuronal_forward.1} parent=11 // pred_region
        _
      $region20: #{red_neuronal_forward.1} parent=11 // pred_fallthru
        _
      // Predicated region
      $region21: #{red_neuronal_forward.1} parent=11 // pred_check
        %p212 = pneg %p102
      $region22: #{red_neuronal_forward.1} parent=11 // pred_check_branch
        %214 = sbr.rel (%p212) target = $region24
      $region23: #{red_neuronal_forward.1} parent=11 // pred_region
        _
      $region24: #{red_neuronal_forward.1} parent=11 // pred_fallthru
        _
      // Predicated region
      $region25: #{red_neuronal_forward.1} parent=11 // pred_check
        %p215 = pneg %p123
      $region26: #{red_neuronal_forward.1} parent=11 // pred_check_branch
        %217 = sbr.rel (%p215) target = $region28
      $region27: #{red_neuronal_forward.1} parent=11 // pred_region
        _
      $region28: #{red_neuronal_forward.1} parent=11 // pred_fallthru
        _
      // Predicated region
      $region29: #{red_neuronal_forward.1} parent=11 // pred_check
        %p218 = pneg %p144
      $region30: #{red_neuronal_forward.1} parent=11 // pred_check_branch
        %220 = sbr.rel (%p218) target = $region32
      $region31: #{red_neuronal_forward.1} parent=11 // pred_region
        _
      $region32: #{red_neuronal_forward.1} parent=11 // pred_fallthru
        _
      // Predicated region
      $region33: #{red_neuronal_forward.1} parent=11 // pred_check
        %p221 = pneg %p165
      $region34: #{red_neuronal_forward.1} parent=11 // pred_check_branch
        %223 = sbr.rel (%p221) target = $region36
      $region35: #{red_neuronal_forward.1} parent=11 // pred_region
        _
      $region36: #{red_neuronal_forward.1} parent=11 // pred_fallthru
        _
    $region12: #{red_neuronal_forward.1} parent=5 // pred_fallthru
      _
    %p224 = scmp.lt.s32.totalorder %s13, 4
    // Predicated region
    $region37: #{red_neuronal_forward.1} parent=5 // pred_check
      %p225 = pneg %p224
    $region38: #{red_neuronal_forward.1} parent=5 // pred_check_branch
      %227 = sbr.rel (%p225) target = $region40
    $region39: #{red_neuronal_forward.1} parent=5 // pred_region
      // Predicated region
      $region41: #{red_neuronal_forward.1} parent=39 // pred_check
        %p228 = pneg %p33
      $region42: #{red_neuronal_forward.1} parent=39 // pred_check_branch
        %230 = sbr.rel (%p228) target = $region44
      $region43: #{red_neuronal_forward.1} parent=39 // pred_region
        %s231 = smul.u32 2, %s13
        %p232 = scmp.lt.s32.totalorder %s231, 7
        %s233 = scalar_select %p232, %s231, 7
        %s234 = smul.addr %s233, 7
        %s235 = smul.addr %s234, 4
        %s236 = scalar_lea.vmem %s0, %s235
        %s237 = smul.u32 2, %s13
      $region44: #{red_neuronal_forward.1} parent=39 // pred_fallthru
        _
    $region40: #{red_neuronal_forward.1} parent=5 // pred_fallthru
      _
    %p238 = scmp.le.s32.totalorder 1, %s13
    %p239 = scmp.lt.s32.totalorder %s13, 5
    %p240 = pnand %p238, %p239
    %p241 = pneg %p240
    // Predicated region
    $region45: #{red_neuronal_forward.1} parent=5 // pred_check
      _
    $region46: #{red_neuronal_forward.1} parent=5 // pred_check_branch
      %243 = sbr.rel (%p240) target = $region48
    $region47: #{red_neuronal_forward.1} parent=5 // pred_region
      %s244 = ssub.s32 %s13, 1
      %s245 = smul.u32 2, %s18
      %p246 = scmp.lt.s32.totalorder %s245, 7
      %s247 = scalar_select %p246, %s245, 7
      %s248 = smul.addr %s247, 7
      %s249 = smul.addr %s248, 4
      %s250 = scalar_lea.vmem %s0, %s249
      %p251 = pneg %p39
      %p252 = pneg %p36
      %p253 = pneg %p60
      %p254 = pneg %p57
      %p255 = pneg %p81
      %p256 = pneg %p78
      %p257 = pneg %p102
      %p258 = pneg %p99
      %p259 = pneg %p123
      %p260 = pneg %p120
      %p261 = pneg %p144
      %p262 = pneg %p141
      %p263 = pneg %p165
      %p264 = pneg %p162
      %p265 = pneg %p191
      %p266 = pneg %p188
      %s267 = smul.u32 2, %s18
      %p268 = scmp.lt.s32.totalorder %s267, 7
      %s269 = scalar_select %p268, %s267, 7
      %s270 = smul.addr %s269, 8
      %s271 = scalar_lea.vmem %s7, %s270
      %s272 = smul.u32 2, %s18
      %p273 = scmp.lt.s32.totalorder %s272, 7
      %s274 = scalar_select %p273, %s272, 7
      %s275 = smul.addr %s274, 7
      %s276 = smul.addr %s275, 4
      %s277 = scalar_lea.vmem %s0, %s276
      %s278 = smul.u32 2, %s18
      %s279 = smul.u32 2, %s18
      %p280 = scmp.lt.s32.totalorder %s279, 7
      %s281 = scalar_select %p280, %s279, 7
      %s282 = smul.addr %s281, 8
      %s283 = scalar_lea.vmem %s7, %s282
      %s284 = smul.u32 2, %s18
      %v286 = vld [vmem:[%s277] sm:$0xff]
      %v287 = vld [vmem:[%s277 + $0x8] sm:$0xff]
      %v288 = vld [vmem:[%s277 + $0x10] sm:$0xff]
      %v289 = vld [vmem:[%s277 + $0x18] sm:$0xf]
      %v290 = vld [vmem:[%s277 + $0x1c] sm:$0xff]
      %v291 = vld [vmem:[%s277 + $0x24] sm:$0xff]
      %v292 = vld [vmem:[%s277 + $0x2c] sm:$0xff]
      %v293 = vld [vmem:[%s277 + $0x34] sm:$0xf]
      %v294 = vld [vmem:[%s1] sm:$0xf]
      %v295 = vld [vmem:[%s1 + $0x4] sm:$0xf]
      %v296 = vld [vmem:[%s1 + $0x8] sm:$0xf]
      %v297 = vld [vmem:[%s1 + $0xc] sm:$0xf]
      %v298 = vld [vmem:[%s1 + $0x10] sm:$0xf]
      %v299 = vld [vmem:[%s1 + $0x14] sm:$0xf]
      %v300 = vld [vmem:[%s1 + $0x18] sm:$0xf]
      %v301 = vld [vmem:[%s1 + $0x1c] sm:$0xf]
      %v302 = vld [vmem:[%s1 + $0x20] sm:$0xf]
      %v303 = vld [vmem:[%s1 + $0x24] sm:$0xf]
      %v304 = vld [vmem:[%s1 + $0x28] sm:$0xf]
      %v305 = vld [vmem:[%s1 + $0x2c] sm:$0xf]
      %v306 = vld [vmem:[%s1 + $0x30] sm:$0xf]
      %v307 = vld [vmem:[%s1 + $0x34] sm:$0xf]
      %v308 = vld [vmem:[%s1 + $0x38] sm:$0xf]
      %v309 = vld [vmem:[%s1 + $0x3c] sm:$0xf]
      %v310 = vld [vmem:[%s1 + $0x40] sm:$0xf]
      %v311 = vld [vmem:[%s1 + $0x44] sm:$0xf]
      %v312 = vld [vmem:[%s1 + $0x48] sm:$0xf]
      %v313 = vld [vmem:[%s1 + $0x4c] sm:$0xf]
      %v314 = vld [vmem:[%s1 + $0x50] sm:$0xf]
      %v315 = vld [vmem:[%s1 + $0x54] sm:$0xf]
      %v316 = vld [vmem:[%s1 + $0x58] sm:$0xf]
      %v317 = vld [vmem:[%s1 + $0x5c] sm:$0xf]
      %v318 = vld [vmem:[%s1 + $0x60] sm:$0xf]
      %v319 = vld [vmem:[%s1 + $0x64] sm:$0xf]
      %v320 = vld [vmem:[%s1 + $0x68] sm:$0xf]
      %v321 = vld [vmem:[%s1 + $0x6c] sm:$0xf]
      %v322 = vld [vmem:[%s1 + $0x70] sm:$0xf]
      %v323 = vld [vmem:[%s1 + $0x74] sm:$0xf]
      %v324 = vld [vmem:[%s1 + $0x78] sm:$0xf]
      %v325 = vld [vmem:[%s1 + $0x7c] sm:$0xf]
      %v326 = vld [vmem:[%s1 + $0x80] sm:$0xf]
      %v327 = vld [vmem:[%s1 + $0x84] sm:$0xf]
      %v328 = vld [vmem:[%s1 + $0x88] sm:$0xf]
      %v329 = vld [vmem:[%s1 + $0x8c] sm:$0xf]
      %v330 = vld [vmem:[%s1 + $0x90] sm:$0xf]
      %v331 = vld [vmem:[%s1 + $0x94] sm:$0xf]
      %v332 = vld [vmem:[%s1 + $0x98] sm:$0xf]
      %v333 = vld [vmem:[%s1 + $0x9c] sm:$0xf]
      %v334 = vld [vmem:[%s1 + $0xa0] sm:$0xf]
      %v335 = vld [vmem:[%s1 + $0xa4] sm:$0xf]
      %v336 = vld [vmem:[%s1 + $0xa8] sm:$0xf]
      %v337 = vld [vmem:[%s1 + $0xac] sm:$0xf]
      %v338 = vld [vmem:[%s1 + $0xb0] sm:$0xf]
      %v339 = vld [vmem:[%s1 + $0xb4] sm:$0xf]
      %v340 = vld [vmem:[%s1 + $0xb8] sm:$0xf]
      %v341 = vld [vmem:[%s1 + $0xbc] sm:$0xf]
      %v342 = vld [vmem:[%s1 + $0xc0] sm:$0xf]
      %v343 = vld [vmem:[%s1 + $0xc4] sm:$0xf]
      %v344 = vld [vmem:[%s1 + $0xc8] sm:$0xf]
      %v345 = vld [vmem:[%s1 + $0xcc] sm:$0xf]
      %v346 = vld [vmem:[%s1 + $0xd0] sm:$0xf]
      %v347 = vld [vmem:[%s1 + $0xd4] sm:$0xf]
      %v348 = vld [vmem:[%s1 + $0xd8] sm:$0xf]
      %v349 = vld [vmem:[%s1 + $0xdc] sm:$0xf]
      %v350 = vld [vmem:[%s1 + $0xe0] sm:$0xf]
      %v351 = vld [vmem:[%s1 + $0xe4] sm:$0xf]
      %v352 = vld [vmem:[%s1 + $0xe8] sm:$0xf]
      %v353 = vld [vmem:[%s1 + $0xec] sm:$0xf]
      %v354 = vld [vmem:[%s1 + $0xf0] sm:$0xf]
      %v355 = vld [vmem:[%s1 + $0xf4] sm:$0xf]
      %v356 = vld [vmem:[%s1 + $0xf8] sm:$0xf]
      %v357 = vld [vmem:[%s1 + $0xfc] sm:$0xf]
      %v358 = vld [vmem:[%s1 + $0x100] sm:$0xf]
      %v359 = vld [vmem:[%s1 + $0x104] sm:$0xf]
      %v360 = vld [vmem:[%s1 + $0x108] sm:$0xf]
      %v361 = vld [vmem:[%s1 + $0x10c] sm:$0xf]
      %v362 = vld [vmem:[%s1 + $0x110] sm:$0xf]
      %v363 = vld [vmem:[%s1 + $0x114] sm:$0xf]
      %v364 = vld [vmem:[%s1 + $0x118] sm:$0xf]
      %v365 = vld [vmem:[%s1 + $0x11c] sm:$0xf]
      %v366 = vld [vmem:[%s1 + $0x120] sm:$0xf]
      %v367 = vld [vmem:[%s1 + $0x124] sm:$0xf]
      %v368 = vld [vmem:[%s1 + $0x128] sm:$0xf]
      %v369 = vld [vmem:[%s1 + $0x12c] sm:$0xf]
      %v370 = vld [vmem:[%s1 + $0x130] sm:$0xf]
      %v371 = vld [vmem:[%s1 + $0x134] sm:$0xf]
      %v372 = vld [vmem:[%s1 + $0x138] sm:$0xf]
      %v373 = vld [vmem:[%s1 + $0x13c] sm:$0xf]
      %v374 = vld [vmem:[%s1 + $0x140] sm:$0xf]
      %v375 = vld [vmem:[%s1 + $0x144] sm:$0xf]
      %v376 = vld [vmem:[%s1 + $0x148] sm:$0xf]
      %v377 = vld [vmem:[%s1 + $0x14c] sm:$0xf]
      %v378 = vld [vmem:[%s1 + $0x150] sm:$0xf]
      %v379 = vld [vmem:[%s1 + $0x154] sm:$0xf]
      %v380 = vld [vmem:[%s1 + $0x158] sm:$0xf]
      %v381 = vld [vmem:[%s1 + $0x15c] sm:$0xf]
      %v382 = vld [vmem:[%s1 + $0x160] sm:$0xf]
      %v383 = vld [vmem:[%s1 + $0x164] sm:$0xf]
      %v384 = vld [vmem:[%s1 + $0x168] sm:$0xf]
      %v385 = vld [vmem:[%s1 + $0x16c] sm:$0xf]
      %v386 = vld [vmem:[%s1 + $0x170] sm:$0xf]
      %v387 = vld [vmem:[%s1 + $0x174] sm:$0xf]
      %v388 = vld [vmem:[%s1 + $0x178] sm:$0xf]
      %v389 = vld [vmem:[%s1 + $0x17c] sm:$0xf]
      %v390 = vld [vmem:[%s1 + $0x180] sm:$0xf]
      %v391 = vld [vmem:[%s1 + $0x184] sm:$0xf]
      %v392 = vld [vmem:[%s2] sm:$0x1]
      %v394 = vlaneseq
      %v395 = vshrl.u32 %v394, 7
      %v396 = vsub.s32 0, %v395
      %v397 = vrot.slane %v392, %v396
      %v407 = vunpack.c.l.b16 %v286
      %v408 = vunpack.c.h.b16 %v286
      %v409 = vunpack.c.l.b16 %v287
      %v410 = vunpack.c.h.b16 %v287
      %v411 = vunpack.c.l.b16 %v288
      %v412 = vunpack.c.h.b16 %v288
      %v413 = vunpack.c.l.b16 %v289
      %v414 = vunpack.c.l.b16 %v290
      %v415 = vunpack.c.h.b16 %v290
      %v416 = vunpack.c.l.b16 %v291
      %v417 = vunpack.c.h.b16 %v291
      %v418 = vunpack.c.l.b16 %v292
      %v419 = vunpack.c.h.b16 %v292
      %v420 = vunpack.c.l.b16 %v293
      %v421 = vpack.c.b16 %v414, %v407
      %v422 = vpack.c.b16 %v415, %v408
      %v423 = vpack.c.b16 %v416, %v409
      %v424 = vpack.c.b16 %v417, %v410
      %v425 = vpack.c.b16 %v418, %v411
      %v426 = vpack.c.b16 %v419, %v412
      %v427 = vpack.c.b16 %v420, %v413
      %v532 = vunpack.c.l.b16 %v294
      %v533 = vunpack.c.l.b16 %v295
      %v534 = vunpack.c.l.b16 %v296
      %v535 = vunpack.c.l.b16 %v297
      %v536 = vunpack.c.l.b16 %v298
      %v537 = vunpack.c.l.b16 %v299
      %v538 = vunpack.c.l.b16 %v300
      %v539 = vunpack.c.l.b16 %v301
      %v540 = vunpack.c.l.b16 %v302
      %v541 = vunpack.c.l.b16 %v303
      %v542 = vunpack.c.l.b16 %v304
      %v543 = vunpack.c.l.b16 %v305
      %v544 = vunpack.c.l.b16 %v306
      %v545 = vunpack.c.l.b16 %v307
      %v546 = vunpack.c.l.b16 %v308
      %v547 = vunpack.c.l.b16 %v309
      %v548 = vunpack.c.l.b16 %v310
      %v549 = vunpack.c.l.b16 %v311
      %v550 = vunpack.c.l.b16 %v312
      %v551 = vunpack.c.l.b16 %v313
      %v552 = vunpack.c.l.b16 %v314
      %v553 = vunpack.c.l.b16 %v315
      %v554 = vunpack.c.l.b16 %v316
      %v555 = vunpack.c.l.b16 %v317
      %v556 = vunpack.c.l.b16 %v318
      %v557 = vunpack.c.l.b16 %v319
      %v558 = vunpack.c.l.b16 %v320
      %v559 = vunpack.c.l.b16 %v321
      %v560 = vunpack.c.l.b16 %v322
      %v561 = vunpack.c.l.b16 %v323
      %v562 = vunpack.c.l.b16 %v324
      %v563 = vunpack.c.l.b16 %v325
      %v564 = vunpack.c.l.b16 %v326
      %v565 = vunpack.c.l.b16 %v327
      %v566 = vunpack.c.l.b16 %v328
      %v567 = vunpack.c.l.b16 %v329
      %v568 = vunpack.c.l.b16 %v330
      %v569 = vunpack.c.l.b16 %v331
      %v570 = vunpack.c.l.b16 %v332
      %v571 = vunpack.c.l.b16 %v333
      %v572 = vunpack.c.l.b16 %v334
      %v573 = vunpack.c.l.b16 %v335
      %v574 = vunpack.c.l.b16 %v336
      %v575 = vunpack.c.l.b16 %v337
      %v576 = vunpack.c.l.b16 %v338
      %v577 = vunpack.c.l.b16 %v339
      %v578 = vunpack.c.l.b16 %v340
      %v579 = vunpack.c.l.b16 %v341
      %v580 = vunpack.c.l.b16 %v342
      %v581 = vunpack.c.l.b16 %v343
      %v582 = vunpack.c.l.b16 %v344
      %v583 = vunpack.c.l.b16 %v345
      %v584 = vunpack.c.l.b16 %v346
      %v585 = vunpack.c.l.b16 %v347
      %v586 = vunpack.c.l.b16 %v348
      %v587 = vunpack.c.l.b16 %v349
      %v588 = vunpack.c.l.b16 %v350
      %v589 = vunpack.c.l.b16 %v351
      %v590 = vunpack.c.l.b16 %v352
      %v591 = vunpack.c.l.b16 %v353
      %v592 = vunpack.c.l.b16 %v354
      %v593 = vunpack.c.l.b16 %v355
      %v594 = vunpack.c.l.b16 %v356
      %v595 = vunpack.c.l.b16 %v357
      %v596 = vunpack.c.l.b16 %v358
      %v597 = vunpack.c.l.b16 %v359
      %v598 = vunpack.c.l.b16 %v360
      %v599 = vunpack.c.l.b16 %v361
      %v600 = vunpack.c.l.b16 %v362
      %v601 = vunpack.c.l.b16 %v363
      %v602 = vunpack.c.l.b16 %v364
      %v603 = vunpack.c.l.b16 %v365
      %v604 = vunpack.c.l.b16 %v366
      %v605 = vunpack.c.l.b16 %v367
      %v606 = vunpack.c.l.b16 %v368
      %v607 = vunpack.c.l.b16 %v369
      %v608 = vunpack.c.l.b16 %v370
      %v609 = vunpack.c.l.b16 %v371
      %v610 = vunpack.c.l.b16 %v372
      %v611 = vunpack.c.l.b16 %v373
      %v612 = vunpack.c.l.b16 %v374
      %v613 = vunpack.c.l.b16 %v375
      %v614 = vunpack.c.l.b16 %v376
      %v615 = vunpack.c.l.b16 %v377
      %v616 = vunpack.c.l.b16 %v378
      %v617 = vunpack.c.l.b16 %v379
      %v618 = vunpack.c.l.b16 %v380
      %v619 = vunpack.c.l.b16 %v381
      %v620 = vunpack.c.l.b16 %v382
      %v621 = vunpack.c.l.b16 %v383
      %v622 = vunpack.c.l.b16 %v384
      %v623 = vunpack.c.l.b16 %v385
      %v624 = vunpack.c.l.b16 %v386
      %v625 = vunpack.c.l.b16 %v387
      %v626 = vunpack.c.l.b16 %v388
      %v627 = vunpack.c.l.b16 %v389
      %v628 = vunpack.c.l.b16 %v390
      %v629 = vunpack.c.l.b16 %v391
      %v630 = vpack.c.b16 %v533, %v532
      %v631 = vpack.c.b16 %v535, %v534
      %v632 = vpack.c.b16 %v537, %v536
      %v633 = vpack.c.b16 %v539, %v538
      %v634 = vpack.c.b16 %v541, %v540
      %v635 = vpack.c.b16 %v543, %v542
      %v636 = vpack.c.b16 %v545, %v544
      %v637 = vpack.c.b16 %v547, %v546
      %v638 = vpack.c.b16 %v549, %v548
      %v639 = vpack.c.b16 %v551, %v550
      %v640 = vpack.c.b16 %v553, %v552
      %v641 = vpack.c.b16 %v555, %v554
      %v642 = vpack.c.b16 %v557, %v556
      %v643 = vpack.c.b16 %v559, %v558
      %v644 = vpack.c.b16 %v561, %v560
      %v645 = vpack.c.b16 %v563, %v562
      %v646 = vpack.c.b16 %v565, %v564
      %v647 = vpack.c.b16 %v567, %v566
      %v648 = vpack.c.b16 %v569, %v568
      %v649 = vpack.c.b16 %v571, %v570
      %v650 = vpack.c.b16 %v573, %v572
      %v651 = vpack.c.b16 %v575, %v574
      %v652 = vpack.c.b16 %v577, %v576
      %v653 = vpack.c.b16 %v579, %v578
      %v654 = vpack.c.b16 %v581, %v580
      %v655 = vpack.c.b16 %v583, %v582
      %v656 = vpack.c.b16 %v585, %v584
      %v657 = vpack.c.b16 %v587, %v586
      %v658 = vpack.c.b16 %v589, %v588
      %v659 = vpack.c.b16 %v591, %v590
      %v660 = vpack.c.b16 %v593, %v592
      %v661 = vpack.c.b16 %v595, %v594
      %v662 = vpack.c.b16 %v597, %v596
      %v663 = vpack.c.b16 %v599, %v598
      %v664 = vpack.c.b16 %v601, %v600
      %v665 = vpack.c.b16 %v603, %v602
      %v666 = vpack.c.b16 %v605, %v604
      %v667 = vpack.c.b16 %v607, %v606
      %v668 = vpack.c.b16 %v609, %v608
      %v669 = vpack.c.b16 %v611, %v610
      %v670 = vpack.c.b16 %v613, %v612
      %v671 = vpack.c.b16 %v615, %v614
      %v672 = vpack.c.b16 %v617, %v616
      %v673 = vpack.c.b16 %v619, %v618
      %v674 = vpack.c.b16 %v621, %v620
      %v675 = vpack.c.b16 %v623, %v622
      %v676 = vpack.c.b16 %v625, %v624
      %v677 = vpack.c.b16 %v627, %v626
      %v678 = vpack.c.b16 %v629, %v628
      %vm728 = vcmask 130048
      %v730 = vsel %vm728, %v427, 0
      %732 = vmatprep.subr.bf16.mxu0 0
      %733 = vmatpush1.bf16.msra.mxu0 %v630
      %734 = vmatprep.subr.bf16.mxu0 0
      %735 = vmatpush1.bf16.msra.mxu0 %v631
      %736 = vmatprep.subr.bf16.mxu0 0
      %737 = vmatpush1.bf16.msra.mxu0 %v632
      %738 = vmatprep.subr.bf16.mxu0 0
      %739 = vmatpush1.bf16.msra.mxu0 %v633
      %740 = vmatprep.subr.bf16.mxu0 0
      %741 = vmatpush1.bf16.msra.mxu0 %v634
      %742 = vmatprep.subr.bf16.mxu0 0
      %743 = vmatpush1.bf16.msra.mxu0 %v635
      %744 = vmatprep.subr.bf16.mxu0 0
      %745 = vmatpush1.bf16.msra.mxu0 %v636
      %746 = vmatprep.subr.bf16.mxu0 0
      %747 = vmatpush1.bf16.msra.mxu0 %v637
      %748 = vmatprep.subr.bf16.mxu0 0
      %749 = vmatpush1.bf16.msra.mxu0 %v638
      %750 = vmatprep.subr.bf16.mxu0 0
      %751 = vmatpush1.bf16.msra.mxu0 %v639
      %752 = vmatprep.subr.bf16.mxu0 0
      %753 = vmatpush1.bf16.msra.mxu0 %v640
      %754 = vmatprep.subr.bf16.mxu0 0
      %755 = vmatpush1.bf16.msra.mxu0 %v641
      %756 = vmatprep.subr.bf16.mxu0 0
      %757 = vmatpush1.bf16.msra.mxu0 %v642
      %758 = vmatprep.subr.bf16.mxu0 0
      %759 = vmatpush1.bf16.msra.mxu0 %v643
      %760 = vmatprep.subr.bf16.mxu0 0
      %761 = vmatpush1.bf16.msra.mxu0 %v644
      %762 = vmatprep.subr.bf16.mxu0 0
      %763 = vmatpush1.bf16.msra.mxu0 %v645
      %764 = vmatprep.mubr.bf16.mxu0 %v422
      %765 = vmatmul.mubr.bf16.gmra.mrb[0].mxu0 %v421
      %v766 = vpop.f32.mrb[0].mxu0
      %v767 = vadd.f32 %v397, %v766
      %v768 = vpop.f32.mrb[0].mxu0
      %v769 = vpop.f32.mrb[0].mxu0
      %v770 = vadd.f32 %v397, %v769
      %v771 = vpop.f32.mrb[0].mxu0
      %772 = vdwg.mxu0
      %773 = vmatprep.subr.bf16.mxu0 0
      %774 = vmatpush1.bf16.msra.mxu0 %v646
      %775 = vmatprep.subr.bf16.mxu0 0
      %776 = vmatpush1.bf16.msra.mxu0 %v647
      %777 = vmatprep.subr.bf16.mxu0 0
      %778 = vmatpush1.bf16.msra.mxu0 %v648
      %779 = vmatprep.subr.bf16.mxu0 0
      %780 = vmatpush1.bf16.msra.mxu0 %v649
      %781 = vmatprep.subr.bf16.mxu0 0
      %782 = vmatpush1.bf16.msra.mxu0 %v650
      %783 = vmatprep.subr.bf16.mxu0 0
      %784 = vmatpush1.bf16.msra.mxu0 %v651
      %785 = vmatprep.subr.bf16.mxu0 0
      %786 = vmatpush1.bf16.msra.mxu0 %v652
      %787 = vmatprep.subr.bf16.mxu0 0
      %788 = vmatpush1.bf16.msra.mxu0 %v653
      %789 = vmatprep.subr.bf16.mxu0 0
      %790 = vmatpush1.bf16.msra.mxu0 %v654
      %791 = vmatprep.subr.bf16.mxu0 0
      %792 = vmatpush1.bf16.msra.mxu0 %v655
      %793 = vmatprep.subr.bf16.mxu0 0
      %794 = vmatpush1.bf16.msra.mxu0 %v656
      %795 = vmatprep.subr.bf16.mxu0 0
      %796 = vmatpush1.bf16.msra.mxu0 %v657
      %797 = vmatprep.subr.bf16.mxu0 0
      %798 = vmatpush1.bf16.msra.mxu0 %v658
      %799 = vmatprep.subr.bf16.mxu0 0
      %800 = vmatpush1.bf16.msra.mxu0 %v659
      %801 = vmatprep.subr.bf16.mxu0 0
      %802 = vmatpush1.bf16.msra.mxu0 %v660
      %803 = vmatprep.subr.bf16.mxu0 0
      %804 = vmatpush1.bf16.msra.mxu0 %v661
      %805 = vmatprep.mubr.bf16.mxu0 %v424
      %806 = vmatmul.mubr.bf16.gmra.mrb[0].mxu0 %v423
      %v807 = vpop.f32.mrb[0].mxu0
      %v808 = vadd.f32 %v767, %v807
      %v809 = vpop.f32.mrb[0].mxu0
      %v810 = vpop.f32.mrb[0].mxu0
      %v811 = vadd.f32 %v770, %v810
      %v812 = vpop.f32.mrb[0].mxu0
      %813 = vdwg.mxu0
      %814 = vmatprep.subr.bf16.mxu0 0
      %815 = vmatpush1.bf16.msra.mxu0 %v662
      %816 = vmatprep.subr.bf16.mxu0 0
      %817 = vmatpush1.bf16.msra.mxu0 %v663
      %818 = vmatprep.subr.bf16.mxu0 0
      %819 = vmatpush1.bf16.msra.mxu0 %v664
      %820 = vmatprep.subr.bf16.mxu0 0
      %821 = vmatpush1.bf16.msra.mxu0 %v665
      %822 = vmatprep.subr.bf16.mxu0 0
      %823 = vmatpush1.bf16.msra.mxu0 %v666
      %824 = vmatprep.subr.bf16.mxu0 0
      %825 = vmatpush1.bf16.msra.mxu0 %v667
      %826 = vmatprep.subr.bf16.mxu0 0
      %827 = vmatpush1.bf16.msra.mxu0 %v668
      %828 = vmatprep.subr.bf16.mxu0 0
      %829 = vmatpush1.bf16.msra.mxu0 %v669
      %830 = vmatprep.subr.bf16.mxu0 0
      %831 = vmatpush1.bf16.msra.mxu0 %v670
      %832 = vmatprep.subr.bf16.mxu0 0
      %833 = vmatpush1.bf16.msra.mxu0 %v671
      %834 = vmatprep.subr.bf16.mxu0 0
      %835 = vmatpush1.bf16.msra.mxu0 %v672
      %836 = vmatprep.subr.bf16.mxu0 0
      %837 = vmatpush1.bf16.msra.mxu0 %v673
      %838 = vmatprep.subr.bf16.mxu0 0
      %839 = vmatpush1.bf16.msra.mxu0 %v674
      %840 = vmatprep.subr.bf16.mxu0 0
      %841 = vmatpush1.bf16.msra.mxu0 %v675
      %842 = vmatprep.subr.bf16.mxu0 0
      %843 = vmatpush1.bf16.msra.mxu0 %v676
      %844 = vmatprep.subr.bf16.mxu0 0
      %845 = vmatpush1.bf16.msra.mxu0 %v677
      %846 = vmatprep.mubr.bf16.mxu0 %v426
      %847 = vmatmul.mubr.bf16.gmra.mrb[0].mxu0 %v425
      %v848 = vpop.f32.mrb[0].mxu0
      %v849 = vadd.f32 %v808, %v848
      %v850 = vpop.f32.mrb[0].mxu0
      %v851 = vpop.f32.mrb[0].mxu0
      %v852 = vadd.f32 %v811, %v851
      %v853 = vpop.f32.mrb[0].mxu0
      %854 = vdwg.mxu0
      %855 = vmatprep.subr.bf16.mxu0 0
      %856 = vmatpush1.bf16.msra.mxu0 %v678
      %857 = vmatprep.subr.bf16.mxu0 0
      %858 = vmatpush1.bf16.msra.mxu0 0
      %859 = vmatprep.subr.bf16.mxu0 0
      %860 = vmatpush1.bf16.msra.mxu0 0
      %861 = vmatprep.subr.bf16.mxu0 0
      %862 = vmatpush1.bf16.msra.mxu0 0
      %863 = vmatprep.subr.bf16.mxu0 0
      %864 = vmatpush1.bf16.msra.mxu0 0
      %865 = vmatprep.subr.bf16.mxu0 0
      %866 = vmatpush1.bf16.msra.mxu0 0
      %867 = vmatprep.subr.bf16.mxu0 0
      %868 = vmatpush1.bf16.msra.mxu0 0
      %869 = vmatprep.subr.bf16.mxu0 0
      %870 = vmatpush1.bf16.msra.mxu0 0
      %871 = vmatprep.subr.bf16.mxu0 0
      %872 = vmatpush1.bf16.msra.mxu0 0
      %873 = vmatprep.subr.bf16.mxu0 0
      %874 = vmatpush1.bf16.msra.mxu0 0
      %875 = vmatprep.subr.bf16.mxu0 0
      %876 = vmatpush1.bf16.msra.mxu0 0
      %877 = vmatprep.subr.bf16.mxu0 0
      %878 = vmatpush1.bf16.msra.mxu0 0
      %879 = vmatprep.subr.bf16.mxu0 0
      %880 = vmatpush1.bf16.msra.mxu0 0
      %881 = vmatprep.subr.bf16.mxu0 0
      %882 = vmatpush1.bf16.msra.mxu0 0
      %883 = vmatprep.subr.bf16.mxu0 0
      %884 = vmatpush1.bf16.msra.mxu0 0
      %885 = vmatprep.subr.bf16.mxu0 0
      %886 = vmatpush1.bf16.msra.mxu0 0
      %887 = vmatprep.mubr.bf16.mxu0 0
      %888 = vmatmul.mubr.bf16.gmra.mrb[0].mxu0 %v730
      %v889 = vpop.f32.mrb[0].mxu0
      %v890 = vadd.f32 %v849, %v889
      %v891 = vpop.f32.mrb[0].mxu0
      %v892 = vpop.f32.mrb[0].mxu0
      %v893 = vadd.f32 %v852, %v892
      %v894 = vpop.f32.mrb[0].mxu0
      %895 = vdwg.mxu0
      %v896 = vmax.f32 %v890, 0.0
      %v897 = vmax.f32 %v893, 0.0
      %v898 = vpack.c.bf16 %v897, %v896
      %v899 = vld [vmem:[%s3] sm:$0xf]
      %v900 = vld [vmem:[%s3 + $0x4] sm:$0xf]
      %v901 = vld [vmem:[%s3 + $0x8] sm:$0xf]
      %v902 = vld [vmem:[%s3 + $0xc] sm:$0xf]
      %v903 = vld [vmem:[%s3 + $0x10] sm:$0xf]
      %v904 = vld [vmem:[%s3 + $0x14] sm:$0xf]
      %v905 = vld [vmem:[%s3 + $0x18] sm:$0xf]
      %v906 = vld [vmem:[%s3 + $0x1c] sm:$0xf]
      %v907 = vld [vmem:[%s3 + $0x20] sm:$0xf]
      %v908 = vld [vmem:[%s3 + $0x24] sm:$0xf]
      %v909 = vld [vmem:[%s3 + $0x28] sm:$0xf]
      %v910 = vld [vmem:[%s3 + $0x2c] sm:$0xf]
      %v911 = vld [vmem:[%s3 + $0x30] sm:$0xf]
      %v912 = vld [vmem:[%s3 + $0x34] sm:$0xf]
      %v913 = vld [vmem:[%s3 + $0x38] sm:$0xf]
      %v914 = vld [vmem:[%s3 + $0x3c] sm:$0xf]
      %v915 = vld [vmem:[%s4] sm:$0x1]
      %v917 = vlaneseq
      %v918 = vshrl.u32 %v917, 7
      %v919 = vsub.s32 0, %v918
      %v920 = vrot.slane %v915, %v919
      %v938 = vunpack.c.l.b16 %v899
      %v939 = vunpack.c.l.b16 %v900
      %v940 = vunpack.c.l.b16 %v901
      %v941 = vunpack.c.l.b16 %v902
      %v942 = vunpack.c.l.b16 %v903
      %v943 = vunpack.c.l.b16 %v904
      %v944 = vunpack.c.l.b16 %v905
      %v945 = vunpack.c.l.b16 %v906
      %v946 = vunpack.c.l.b16 %v907
      %v947 = vunpack.c.l.b16 %v908
      %v948 = vunpack.c.l.b16 %v909
      %v949 = vunpack.c.l.b16 %v910
      %v950 = vunpack.c.l.b16 %v911
      %v951 = vunpack.c.l.b16 %v912
      %v952 = vunpack.c.l.b16 %v913
      %v953 = vunpack.c.l.b16 %v914
      %v954 = vpack.c.b16 %v939, %v938
      %v955 = vpack.c.b16 %v941, %v940
      %v956 = vpack.c.b16 %v943, %v942
      %v957 = vpack.c.b16 %v945, %v944
      %v958 = vpack.c.b16 %v947, %v946
      %v959 = vpack.c.b16 %v949, %v948
      %v960 = vpack.c.b16 %v951, %v950
      %v961 = vpack.c.b16 %v953, %v952
      %970 = vmatprep.subr.bf16.mxu0 0
      %971 = vmatpush1.bf16.msra.mxu0 %v954
      %972 = vmatprep.subr.bf16.mxu0 0
      %973 = vmatpush1.bf16.msra.mxu0 %v955
      %974 = vmatprep.subr.bf16.mxu0 0
      %975 = vmatpush1.bf16.msra.mxu0 %v956
      %976 = vmatprep.subr.bf16.mxu0 0
      %977 = vmatpush1.bf16.msra.mxu0 %v957
      %978 = vmatprep.subr.bf16.mxu0 0
      %979 = vmatpush1.bf16.msra.mxu0 %v958
      %980 = vmatprep.subr.bf16.mxu0 0
      %981 = vmatpush1.bf16.msra.mxu0 %v959
      %982 = vmatprep.subr.bf16.mxu0 0
      %983 = vmatpush1.bf16.msra.mxu0 %v960
      %984 = vmatprep.subr.bf16.mxu0 0
      %985 = vmatpush1.bf16.msra.mxu0 %v961
      %986 = vmatprep.subr.bf16.mxu0 0
      %987 = vmatpush1.bf16.msra.mxu0 0
      %988 = vmatprep.subr.bf16.mxu0 0
      %989 = vmatpush1.bf16.msra.mxu0 0
      %990 = vmatprep.subr.bf16.mxu0 0
      %991 = vmatpush1.bf16.msra.mxu0 0
      %992 = vmatprep.subr.bf16.mxu0 0
      %993 = vmatpush1.bf16.msra.mxu0 0
      %994 = vmatprep.subr.bf16.mxu0 0
      %995 = vmatpush1.bf16.msra.mxu0 0
      %996 = vmatprep.subr.bf16.mxu0 0
      %997 = vmatpush1.bf16.msra.mxu0 0
      %998 = vmatprep.subr.bf16.mxu0 0
      %999 = vmatpush1.bf16.msra.mxu0 0
      %1000 = vmatprep.subr.bf16.mxu0 0
      %1001 = vmatpush1.bf16.msra.mxu0 0
      %1002 = vmatprep.mubr.bf16.mxu0 0
      %1003 = vmatmul.mubr.bf16.gmra.mrb[0].mxu0 %v898
      %v1004 = vpop.f32.mrb[0].mxu0
      %v1005 = vadd.f32 %v920, %v1004
      %v1006 = vpop.f32.mrb[0].mxu0
      %v1007 = vpop.f32.mrb[0].mxu0
      %v1008 = vadd.f32 %v920, %v1007
      %v1009 = vpop.f32.mrb[0].mxu0
      %1010 = vdwg.mxu0
      %v1011 = vmax.f32 %v1005, 0.0
      %v1012 = vmax.f32 %v1008, 0.0
      %v1013 = vpack.c.bf16 %v1012, %v1011
      %v1014 = vld [vmem:[%s5] sm:$0xf]
      %v1015 = vld [vmem:[%s5 + $0x4] sm:$0xf]
      %v1016 = vld [vmem:[%s5 + $0x8] sm:$0xf]
      %v1017 = vld [vmem:[%s5 + $0xc] sm:$0xf]
      %v1018 = vld [vmem:[%s5 + $0x10] sm:$0xf]
      %v1019 = vld [vmem:[%s5 + $0x14] sm:$0xf]
      %v1020 = vld [vmem:[%s5 + $0x18] sm:$0xf]
      %v1021 = vld [vmem:[%s5 + $0x1c] sm:$0xf]
      %v1022 = vld [vmem:[%s5 + $0x20] sm:$0xf]
      %v1023 = vld [vmem:[%s5 + $0x24] sm:$0xf]
      %v1024 = vld [vmem:[%s5 + $0x28] sm:$0xf]
      %v1025 = vld [vmem:[%s5 + $0x2c] sm:$0xf]
      %v1026 = vld [vmem:[%s5 + $0x30] sm:$0xf]
      %v1027 = vld [vmem:[%s5 + $0x34] sm:$0xf]
      %v1028 = vld [vmem:[%s5 + $0x38] sm:$0xf]
      %v1029 = vld [vmem:[%s5 + $0x3c] sm:$0xf]
      %v1030 = vld [vmem:[%s6] sm:$0x1]
      %v1032 = vlaneseq
      %v1033 = vshrl.u32 %v1032, 7
      %v1034 = vsub.s32 0, %v1033
      %v1035 = vrot.slane %v1030, %v1034
      %v1053 = vunpack.c.l.b16 %v1014
      %v1054 = vunpack.c.l.b16 %v1015
      %v1055 = vunpack.c.l.b16 %v1016
      %v1056 = vunpack.c.l.b16 %v1017
      %v1057 = vunpack.c.l.b16 %v1018
      %v1058 = vunpack.c.l.b16 %v1019
      %v1059 = vunpack.c.l.b16 %v1020
      %v1060 = vunpack.c.l.b16 %v1021
      %v1061 = vunpack.c.l.b16 %v1022
      %v1062 = vunpack.c.l.b16 %v1023
      %v1063 = vunpack.c.l.b16 %v1024
      %v1064 = vunpack.c.l.b16 %v1025
      %v1065 = vunpack.c.l.b16 %v1026
      %v1066 = vunpack.c.l.b16 %v1027
      %v1067 = vunpack.c.l.b16 %v1028
      %v1068 = vunpack.c.l.b16 %v1029
      %v1069 = vpack.c.b16 %v1054, %v1053
      %v1070 = vpack.c.b16 %v1056, %v1055
      %v1071 = vpack.c.b16 %v1058, %v1057
      %v1072 = vpack.c.b16 %v1060, %v1059
      %v1073 = vpack.c.b16 %v1062, %v1061
      %v1074 = vpack.c.b16 %v1064, %v1063
      %v1075 = vpack.c.b16 %v1066, %v1065
      %v1076 = vpack.c.b16 %v1068, %v1067
      %1085 = vmatprep.subr.bf16.mxu0 0
      %1086 = vmatpush1.bf16.msra.mxu0 %v1069
      %1087 = vmatprep.subr.bf16.mxu0 0
      %1088 = vmatpush1.bf16.msra.mxu0 %v1070
      %1089 = vmatprep.subr.bf16.mxu0 0
      %1090 = vmatpush1.bf16.msra.mxu0 %v1071
      %1091 = vmatprep.subr.bf16.mxu0 0
      %1092 = vmatpush1.bf16.msra.mxu0 %v1072
      %1093 = vmatprep.subr.bf16.mxu0 0
      %1094 = vmatpush1.bf16.msra.mxu0 %v1073
      %1095 = vmatprep.subr.bf16.mxu0 0
      %1096 = vmatpush1.bf16.msra.mxu0 %v1074
      %1097 = vmatprep.subr.bf16.mxu0 0
      %1098 = vmatpush1.bf16.msra.mxu0 %v1075
      %1099 = vmatprep.subr.bf16.mxu0 0
      %1100 = vmatpush1.bf16.msra.mxu0 %v1076
      %1101 = vmatprep.subr.bf16.mxu0 0
      %1102 = vmatpush1.bf16.msra.mxu0 0
      %1103 = vmatprep.subr.bf16.mxu0 0
      %1104 = vmatpush1.bf16.msra.mxu0 0
      %1105 = vmatprep.subr.bf16.mxu0 0
      %1106 = vmatpush1.bf16.msra.mxu0 0
      %1107 = vmatprep.subr.bf16.mxu0 0
      %1108 = vmatpush1.bf16.msra.mxu0 0
      %1109 = vmatprep.subr.bf16.mxu0 0
      %1110 = vmatpush1.bf16.msra.mxu0 0
      %1111 = vmatprep.subr.bf16.mxu0 0
      %1112 = vmatpush1.bf16.msra.mxu0 0
      %1113 = vmatprep.subr.bf16.mxu0 0
      %1114 = vmatpush1.bf16.msra.mxu0 0
      %1115 = vmatprep.subr.bf16.mxu0 0
      %1116 = vmatpush1.bf16.msra.mxu0 0
      %1117 = vmatprep.mubr.bf16.mxu0 0
      %1118 = vmatmul.mubr.bf16.gmra.mrb[0].mxu0 %v1013
      %v1119 = vpop.f32.mrb[0].mxu0
      %v1120 = vadd.f32 %v1035, %v1119
      %v1121 = vpop.f32.mrb[0].mxu0
      %v1122 = vpop.f32.mrb[0].mxu0
      %v1123 = vadd.f32 %v1035, %v1122
      %v1124 = vpop.f32.mrb[0].mxu0
      %1125 = vdwg.mxu0
      %1126 = vmax.xlane.f32.xlu0 %v1120
      %v1127 = vpop.xlane.xlu0 %1126
      %1128 = vmax.xlane.f32.xlu0 %v1123
      %v1129 = vpop.xlane.xlu0 %1128
      %v1130 = vsub.f32 %v1120, %v1127
      %v1131 = vsub.f32 %v1123, %v1129
      %v1132 = vmul.f32 %v1130, 1.442695
      %v1133 = vpow.pop %v1132
      %v1134 = vmul.f32 %v1131, 1.442695
      %v1135 = vpow.pop %v1134
      %1136 = vadd.xlane.f32.xlu0 %v1133
      %v1137 = vpop.xlane.xlu0 %1136
      %1138 = vadd.xlane.f32.xlu0 %v1135
      %v1139 = vpop.xlane.xlu0 %1138
      %v1140 = vrcp.pop %v1137
      %v1141 = vmul.f32 %v1133, %v1140
      %v1142 = vrcp.pop %v1139
      %v1143 = vmul.f32 %v1135, %v1142
      %1144 = vst [vmem:[%s283] sm:$0xff] %v1141
      %1145 = vst [vmem:[%s283 + $0x8] sm:$0xff] %v1143
      %s1146 = smul.u32 2, %s18
      %p1147 = scmp.lt.s32.totalorder %s1146, 7
      %s1148 = scalar_select %p1147, %s1146, 7
      %s1149 = smul.addr %s1148, 8
      %s1150 = scalar_lea.vmem %s7, %s1149
      // Predicated region
      $region49: #{red_neuronal_forward.1} parent=47 // pred_check
        %p1151 = pneg %p188
      $region50: #{red_neuronal_forward.1} parent=47 // pred_check_branch
        %1153 = sbr.rel (%p1151) target = $region52
      $region51: #{red_neuronal_forward.1} parent=47 // pred_region
        %s1154 = smul.u32 2, %s18
      $region52: #{red_neuronal_forward.1} parent=47 // pred_fallthru
        _
    $region48: #{red_neuronal_forward.1} parent=5 // pred_fallthru
      _
    %p1155 = scmp.le.s32.totalorder 2, %s13
    // Predicated region
    $region53: #{red_neuronal_forward.1} parent=5 // pred_check
      %p1156 = pneg %p1155
    $region54: #{red_neuronal_forward.1} parent=5 // pred_check_branch
      %1158 = sbr.rel (%p1156) target = $region56
    $region55: #{red_neuronal_forward.1} parent=5 // pred_region
      %s1159 = ssub.s32 %s13, 2
      // Predicated region
      $region57: #{red_neuronal_forward.1} parent=55 // pred_check
        %p1160 = pneg %p194
      $region58: #{red_neuronal_forward.1} parent=55 // pred_check_branch
        %1162 = sbr.rel (%p1160) target = $region60
      $region59: #{red_neuronal_forward.1} parent=55 // pred_region
        %s1163 = smul.u32 2, %s19
        %p1164 = scmp.lt.s32.totalorder %s1163, 7
        %s1165 = scalar_select %p1164, %s1163, 7
        %s1166 = smul.addr %s1165, 8
        %s1167 = scalar_lea.vmem %s7, %s1166
      $region60: #{red_neuronal_forward.1} parent=55 // pred_fallthru
        _
    $region56: #{red_neuronal_forward.1} parent=5 // pred_fallthru
      _
  $region6: #{red_neuronal_forward.1} parent=0 // loop_footer
    %s17 = sadd.s32 1, %s13
  $region7: #{red_neuronal_forward.1} parent=0 // loop_footer_branch
    %12 = sbr.rel target = $region3
  $region8: #{red_neuronal_forward.1} parent=0 // loop_exit
    _

</llo_original>
